<compile_context>
chip_gen: v5e
topology: v5e:2x2
jax: 0.10.0
libtpu: 0.0.40
codegen_flags: <defaults>
</compile_context>

<pallas_src>
import functools
import math

import numpy as np

import jax
import jax.numpy as jnp
from jax.experimental import pallas as pl
from jax.experimental.pallas import tpu as pltpu

VISION_TOKEN_TYPE = 1
LANGUAGE_TOKEN_TYPE = 0


# ---------------------- generation-aware VMEM / tile budget ------------------ #

def _vmem_capacity_bytes():
    try:
        return int(pltpu.get_tpu_info().vmem_capacity_bytes)
    except Exception:
        return 0


_VMEM_CAP = _vmem_capacity_bytes()
if _VMEM_CAP >= 96 * 1024 * 1024:        # 128 MiB parts (v5e / v6e)
    VMEM_LIMIT = 100 * 1024 * 1024
    LIN_BN = 1024
    LIN_BK = 1024
else:                                     # v7x (64 MiB per TC) or unknown
    VMEM_LIMIT = 40 * 1024 * 1024
    LIN_BN = 512
    LIN_BK = 512


def _pick_block(dim, target, quantum):
    """Largest multiple of `quantum` <= target dividing dim, else full dim."""
    if dim <= target:
        return dim
    b = (min(target, dim) // quantum) * quantum
    while b >= quantum:
        if dim % b == 0:
            return b
        b -= quantum
    return dim


def _pad_rows(x, multiple=16):
    r = x.shape[0] % multiple
    if r == 0:
        return x
    return jnp.pad(x, ((0, multiple - r), (0, 0)))


# --------------------------- fused add + RMSNorm --------------------------- #

def _rmsnorm_first_kernel(x_ref, w_ref, o_ref, ro_ref, *, eps):
    x = x_ref[...].astype(jnp.float32)
    ro_ref[...] = x_ref[...]                      # residual = x
    var = jnp.mean(x * x, axis=-1, keepdims=True)
    o_ref[...] = (x * jax.lax.rsqrt(var + eps)
                  * w_ref[...].astype(jnp.float32)).astype(o_ref.dtype)


def _add_rmsnorm_kernel(x_ref, r_ref, w_ref, o_ref, ro_ref, *, eps):
    x = x_ref[...].astype(jnp.float32) + r_ref[...].astype(jnp.float32)
    ro_ref[...] = x.astype(ro_ref.dtype)          # new residual = x + residual
    var = jnp.mean(x * x, axis=-1, keepdims=True)
    o_ref[...] = (x * jax.lax.rsqrt(var + eps)
                  * w_ref[...].astype(jnp.float32)).astype(o_ref.dtype)


def add_rmsnorm(x, residual, w, eps, *, bm=512):
    """Returns (normed, new_residual). residual may be None (first layer)."""
    S, H = x.shape
    bm = _pick_block(S, bm, 16)
    grid = (S // bm,)
    row_spec = pl.BlockSpec((bm, H), lambda i: (i, 0))
    w_spec = pl.BlockSpec((1, H), lambda i: (0, 0))
    out_shape = (jax.ShapeDtypeStruct((S, H), x.dtype),
                 jax.ShapeDtypeStruct((S, H), x.dtype))
    cparams = pltpu.CompilerParams(dimension_semantics=("parallel",),
                                   vmem_limit_bytes=VMEM_LIMIT)
    if residual is None:
        return pl.pallas_call(
            functools.partial(_rmsnorm_first_kernel, eps=eps),
            out_shape=out_shape,
            grid=grid,
            in_specs=[row_spec, w_spec],
            out_specs=(row_spec, row_spec),
            compiler_params=cparams,
        )(x, w)
    return pl.pallas_call(
        functools.partial(_add_rmsnorm_kernel, eps=eps),
        out_shape=out_shape,
        grid=grid,
        in_specs=[row_spec, row_spec, w_spec],
        out_specs=(row_spec, row_spec),
        input_output_aliases={1: 1},   # reuse the old residual HBM buffer
        compiler_params=cparams,
    )(x, residual, w)


# ------------------------------ tiled linear -------------------------------- #

def _linear_kernel(x_ref, w_ref, o_ref, acc_ref):
    k = pl.program_id(2)

    @pl.when(k == 0)
    def _():
        acc_ref[...] = jnp.zeros_like(acc_ref)

    acc_ref[...] += jnp.dot(x_ref[...], w_ref[...],
                            preferred_element_type=jnp.float32)

    @pl.when(k == pl.num_programs(2) - 1)
    def _():
        o_ref[...] = acc_ref[...].astype(o_ref.dtype)


def linear(x, w, out_dtype=None, *, bm=512, bn=None, bk=None):
    M, K = x.shape
    _, N = w.shape
    out_dtype = out_dtype or x.dtype
    bn = LIN_BN if bn is None else bn
    bk = LIN_BK if bk is None else bk
    bm = _pick_block(M, bm, 16)
    bn = _pick_block(N, bn, 128)
    bk = _pick_block(K, bk, 128)
    grid = (M // bm, N // bn, K // bk)
    return pl.pallas_call(
        _linear_kernel,
        out_shape=jax.ShapeDtypeStruct((M, N), out_dtype),
        grid=grid,
        in_specs=[pl.BlockSpec((bm, bk), lambda i, j, k: (i, k)),
                  pl.BlockSpec((bk, bn), lambda i, j, k: (k, j))],
        out_specs=pl.BlockSpec((bm, bn), lambda i, j, k: (i, j)),
        scratch_shapes=[pltpu.VMEM((bm, bn), jnp.float32)],
        compiler_params=pltpu.CompilerParams(
            dimension_semantics=("parallel", "parallel", "arbitrary"),
            vmem_limit_bytes=VMEM_LIMIT),
    )(x, w)


# -------------------------- fused SwiGLU MLP (1 expert) --------------------- #

def _mlp_kernel(x_ref, wg_ref, wu_ref, wd_ref, o_ref, acc_ref):
    j = pl.program_id(1)

    @pl.when(j == 0)
    def _():
        acc_ref[...] = jnp.zeros_like(acc_ref)

    x = x_ref[...]
    g = jnp.dot(x, wg_ref[...], preferred_element_type=jnp.float32)
    u = jnp.dot(x, wu_ref[...], preferred_element_type=jnp.float32)
    a = (g * jax.nn.sigmoid(g) * u).astype(x.dtype)        # SiluAndMul
    acc_ref[...] += jnp.dot(a, wd_ref[...], preferred_element_type=jnp.float32)

    @pl.when(j == pl.num_programs(1) - 1)
    def _():
        o_ref[...] = acc_ref[...].astype(o_ref.dtype)


def mlp_expert(x, gu, wd, inter, *, bm=512, bi=256):
    """out = down( silu(x @ gate) * (x @ up) ), gate/up packed in gu=(H, 2I)."""
    M, H = x.shape
    bm = _pick_block(M, bm, 16)
    bi_b = _pick_block(inter, bi, 128)
    ni = inter // bi_b
    half = inter // bi_b                                     # up-column block offset
    grid = (M // bm, ni)
    return pl.pallas_call(
        _mlp_kernel,
        out_shape=jax.ShapeDtypeStruct((M, H), x.dtype),
        grid=grid,
        in_specs=[
            pl.BlockSpec((bm, H), lambda i, j: (i, 0)),
            pl.BlockSpec((H, bi_b), lambda i, j: (0, j)),                     # gate cols
            pl.BlockSpec((H, bi_b), lambda i, j, half=half: (0, half + j)),   # up cols
            pl.BlockSpec((bi_b, H), lambda i, j: (j, 0)),                     # down rows
        ],
        out_specs=pl.BlockSpec((bm, H), lambda i, j: (i, 0)),
        scratch_shapes=[pltpu.VMEM((bm, H), jnp.float32)],
        compiler_params=pltpu.CompilerParams(
            dimension_semantics=("parallel", "arbitrary"),
            vmem_limit_bytes=VMEM_LIMIT),
    )(x, gu, gu, wd)


# ----------------------- RoPE pre-rotation of Q and K ----------------------- #

def _rope_qk_kernel(q_ref, k_ref, cos_ref, sin_ref, qo_ref, ko_ref, *, scale):
    cos = cos_ref[...]
    sin = sin_ref[...]

    def rot(x):
        x = x.astype(jnp.float32)
        half = x.shape[-1] // 2
        # rotate_half(x) = cat(-x2, x1)
        xr = jnp.concatenate([-x[:, half:], x[:, :half]], axis=-1)
        return x * cos + xr * sin

    # fold the 1/sqrt(head_dim) attention scale into q here (saves a (bq,bk)
    # f32 multiply per attention tile).
    qo_ref[...] = (rot(q_ref[...]) * scale).astype(qo_ref.dtype)
    ko_ref[...] = rot(k_ref[...]).astype(ko_ref.dtype)


def apply_rope_qk(qkv, cos, sin, num_heads, head_dim, *, br=512):
    """Pre-rotate Q/K once. qkv: (S, 3H) packed [q|k|v]; cos/sin: (S, head_dim) f32.
    Returns (q_rot, k_rot) as (S, H) bf16 with 1/sqrt(d) folded into q."""
    S = qkv.shape[0]
    H = num_heads * head_dim
    br = _pick_block(S, br, 16)
    nh = num_heads
    scale = 1.0 / math.sqrt(head_dim)
    kernel = functools.partial(_rope_qk_kernel, scale=scale)
    out_shape = (jax.ShapeDtypeStruct((S, H), qkv.dtype),
                 jax.ShapeDtypeStruct((S, H), qkv.dtype))
    head_spec = lambda h, r: (r, h)
    return pl.pallas_call(
        kernel,
        out_shape=out_shape,
        grid=(num_heads, S // br),
        in_specs=[
            pl.BlockSpec((br, head_dim), head_spec),                              # q
            pl.BlockSpec((br, head_dim), lambda h, r, nh=nh: (r, nh + h)),        # k
            pl.BlockSpec((br, head_dim), lambda h, r: (r, 0)),                    # cos
            pl.BlockSpec((br, head_dim), lambda h, r: (r, 0)),                    # sin
        ],
        out_specs=(pl.BlockSpec((br, head_dim), head_spec),
                   pl.BlockSpec((br, head_dim), head_spec)),
        compiler_params=pltpu.CompilerParams(
            dimension_semantics=("parallel", "parallel"),
            vmem_limit_bytes=VMEM_LIMIT),
    )(qkv, qkv, cos, sin)


# ----------------------- flash attention (causal prefill) ------------------- #

def _flash_attn_kernel(q_ref, k_ref, v_ref, o_ref, m_scr, l_scr, acc_scr,
                       *, blk_q, blk_k):
    qi = pl.program_id(1)
    ki = pl.program_id(2)
    # last kv tile intersecting the causal region of this q tile
    last_ki = ((qi + 1) * blk_q - 1) // blk_k

    @pl.when(ki <= last_ki)                      # causal compute skipping
    def _():
        @pl.when(ki == 0)
        def _():
            m_scr[...] = jnp.full(m_scr.shape, -1e30, jnp.float32)
            l_scr[...] = jnp.zeros(l_scr.shape, jnp.float32)
            acc_scr[...] = jnp.zeros(acc_scr.shape, jnp.float32)

        # q already RoPE'd and pre-scaled; k already RoPE'd.
        s = jax.lax.dot_general(q_ref[...], k_ref[...], (((1,), (1,)), ((), ())),
                                preferred_element_type=jnp.float32)

        # apply the causal mask only on tiles that cross the diagonal
        def _masked(sv):
            row = qi * blk_q + jax.lax.broadcasted_iota(jnp.int32, (blk_q, blk_k), 0)
            col = ki * blk_k + jax.lax.broadcasted_iota(jnp.int32, (blk_q, blk_k), 1)
            return jnp.where(col <= row, sv, -1e30)

        s = jax.lax.cond((ki + 1) * blk_k - 1 > qi * blk_q,
                         _masked, lambda sv: sv, s)

        m_prev = m_scr[...]
        m_new = jnp.maximum(m_prev, jnp.max(s, axis=-1, keepdims=True))
        alpha = jnp.exp(m_prev - m_new)
        p = jnp.exp(s - m_new)
        l_scr[...] = alpha * l_scr[...] + jnp.sum(p, axis=-1, keepdims=True)
        acc_scr[...] = alpha * acc_scr[...] + jnp.dot(
            p.astype(v_ref.dtype), v_ref[...], preferred_element_type=jnp.float32)
        m_scr[...] = m_new

        @pl.when(ki == last_ki)
        def _():
            o_ref[...] = (acc_scr[...] *
                          pl.reciprocal(l_scr[...], approx=True)).astype(o_ref.dtype)


def flash_attention(q_rot, k_rot, qkv, num_heads, head_dim, *, bq=256, bk=256):
    """q_rot/k_rot: (S, H) pre-RoPE'd (q pre-scaled); qkv: (S, 3H) packed (v source).
    Returns (S, H)."""
    S, H = q_rot.shape
    bq = _pick_block(S, bq, 16)
    bk = _pick_block(S, bk, 16)
    nq, nk = S // bq, S // bk
    nh = num_heads

    def kv_row(qi, ki, bq=bq, bk=bk):
        # clamp to the causal bound so skipped tiles revisit the same block
        # -> Pallas issues no new DMA for causally-skipped kv tiles.
        return jnp.minimum(ki, ((qi + 1) * bq - 1) // bk)

    kernel = functools.partial(_flash_attn_kernel, blk_q=bq, blk_k=bk)
    return pl.pallas_call(
        kernel,
        out_shape=jax.ShapeDtypeStruct((S, H), q_rot.dtype),
        grid=(num_heads, nq, nk),
        in_specs=[
            pl.BlockSpec((bq, head_dim), lambda h, qi, ki: (qi, h)),              # q
            pl.BlockSpec((bk, head_dim),
                         lambda h, qi, ki: (kv_row(qi, ki), h)),                  # k
            pl.BlockSpec((bk, head_dim),
                         lambda h, qi, ki, nh=nh: (kv_row(qi, ki), 2 * nh + h)),  # v
        ],
        out_specs=pl.BlockSpec((bq, head_dim), lambda h, qi, ki: (qi, h)),
        scratch_shapes=[pltpu.VMEM((bq, 1), jnp.float32),
                        pltpu.VMEM((bq, 1), jnp.float32),
                        pltpu.VMEM((bq, head_dim), jnp.float32)],
        compiler_params=pltpu.CompilerParams(
            dimension_semantics=("parallel", "parallel", "arbitrary"),
            vmem_limit_bytes=VMEM_LIMIT),
    )(q_rot, k_rot, qkv)


# ------------------------------ JAX glue ------------------------------------ #

def build_position_ids(token_type_ids):
    """Port of cogvlm.build_position_ids (plain JAX glue)."""
    V, L = VISION_TOKEN_TYPE, LANGUAGE_TOKEN_TYPE
    tmp = token_type_ids
    is_boi_eoi = jnp.zeros_like(tmp, dtype=bool)
    is_boi_eoi = is_boi_eoi.at[:, 1:].set((tmp[:, 1:] == V) & (tmp[:, :-1] == L))
    is_boi_eoi = is_boi_eoi.at[:, 0].set(is_boi_eoi[:, 0] | (tmp[:, 0] == V))
    is_boi_eoi = is_boi_eoi.at[:, :-1].set(
        is_boi_eoi[:, :-1] | ((tmp[:, :-1] == V) & (tmp[:, 1:] == L)))
    is_boi_eoi = is_boi_eoi.at[:, -1].set(is_boi_eoi[:, -1] | (tmp[:, -1] == V))
    tmp = jnp.where(is_boi_eoi, L, tmp)
    y = jnp.zeros_like(tmp)
    y = y.at[:, 1:].set(
        ((tmp[:, 1:] == L) | ((tmp[:, 1:] == V) & (tmp[:, :-1] == L))).astype(tmp.dtype))
    return jnp.cumsum(y, axis=-1)


def get_vision_expert_mask(token_type_ids):
    V = VISION_TOKEN_TYPE
    vm = jnp.zeros_like(token_type_ids, dtype=bool)
    vm = vm.at[:, :-1].set((token_type_ids[:, :-1] == V) & (token_type_ids[:, 1:] == V))
    return vm, ~vm


def rotary_cos_sin(position_ids, dim, base=10000.0, scaling_factor=1.0):
    inv_freq = 1.0 / (base ** (jnp.arange(0, dim, 2, dtype=jnp.float32) / dim))
    pos = position_ids.astype(jnp.float32) / scaling_factor
    freqs = pos[:, None] * inv_freq[None, :]
    emb = jnp.concatenate([freqs, freqs], axis=-1)
    return jnp.cos(emb), jnp.sin(emb)


def init_params(key, cfg):
    H, I, V = cfg['hidden'], cfg['inter'], cfg['vocab']
    dt = jnp.bfloat16

    def nrm(k, shape):
        return (jax.random.normal(k, shape, jnp.float32) * 0.02).astype(dt)

    layers = []
    k = key
    for _ in range(cfg['num_layers']):
        ks = jax.random.split(k, 9)
        k = ks[0]
        layers.append(dict(
            ln_in=jnp.ones((1, H), dt),
            ln_post=jnp.ones((1, H), dt),
            qkv_l=nrm(ks[1], (H, 3 * H)),
            qkv_v=nrm(ks[2], (H, 3 * H)),
            o_l=nrm(ks[3], (H, H)),
            o_v=nrm(ks[4], (H, H)),
            gu_l=nrm(ks[5], (H, 2 * I)),   # packed [gate | up]
            gu_v=nrm(ks[6], (H, 2 * I)),
            d_l=nrm(ks[7], (I, H)),
            d_v=nrm(ks[8], (I, H)),
        ))
    ks = jax.random.split(k, 3)
    return dict(embed=nrm(ks[0], (V, H)), layers=layers,
                norm=jnp.ones((1, H), dt), lm_head=nrm(ks[1], (H, V)))


def cogvlm_forward(params, input_ids, position_ids, vision_token_mask, cfg):
    """CogVLMForCausalLM.forward (+ get_logits), batch=1 prefill."""
    B, S = input_ids.shape
    assert B == 1 and S % 8 == 0
    H, NH, D, I = cfg['hidden'], cfg['num_heads'], cfg['head_dim'], cfg['inter']
    eps = cfg['eps']

    # host-side segment boundary: vision tokens are a contiguous prefix in prefill
    vm = np.asarray(vision_token_mask).reshape(-1).astype(bool)
    n_vis = int(vm.sum())
    assert bool(vm[:n_vis].all()) and not bool(vm[n_vis:].any()), \
        "expected contiguous vision-token prefix"

    h = jnp.take(params['embed'], input_ids.reshape(-1), axis=0)     # (S, H) bf16
    cos, sin = rotary_cos_sin(position_ids.reshape(-1), D)           # (S, D) f32

    def routed(x, fn_lang, fn_vis):
        """Run each contiguous expert segment through exactly one expert."""
        # TODO(synk): replace the pad/slice/concat glue with a scalar-prefetch
        # grouped matmul (stacked (2,H,N) weights + per-tile expert id).
        outs = []
        if n_vis > 0:
            outs.append(fn_vis(_pad_rows(x[:n_vis]))[:n_vis])
        if n_vis < x.shape[0]:
            outs.append(fn_lang(_pad_rows(x[n_vis:]))[:x.shape[0] - n_vis])
        return outs[0] if len(outs) == 1 else jnp.concatenate(outs, axis=0)

    residual = None
    for layer in params['layers']:
        # input layernorm (+ residual add)
        h, residual = add_rmsnorm(h, residual, layer['ln_in'], eps)

        # VisionExpertAttention
        qkv = routed(h,
                     lambda x: linear(x, layer['qkv_l']),
                     lambda x: linear(x, layer['qkv_v']))             # (S, 3H)
        q_rot, k_rot = apply_rope_qk(qkv, cos, sin, NH, D)            # (S, H) x2
        attn = flash_attention(q_rot, k_rot, qkv, NH, D)              # (S, H)
        h = routed(attn,
                   lambda x: linear(x, layer['o_l']),
                   lambda x: linear(x, layer['o_v']))

        # post-attention layernorm + VisionExpertMLP
        h, residual = add_rmsnorm(h, residual, layer['ln_post'], eps)
        h = routed(h,
                   lambda x: mlp_expert(x, layer['gu_l'], layer['d_l'], I),
                   lambda x: mlp_expert(x, layer['gu_v'], layer['d_v'], I))

    h, _ = add_rmsnorm(h, residual, params['norm'], eps)
    # get_logits: bf16 output (same dtype as the torch rowwise lm_head).
    logits = linear(h, params['lm_head'])                             # (S, V) bf16
    return h.reshape(B, S, H), logits.reshape(B, S, cfg['vocab'])


# --------------------------------- main -------------------------------------- #

if __name__ == "__main__":
    cfg = dict(hidden=256, num_heads=2, head_dim=128, inter=512,
               vocab=512, num_layers=2, eps=1e-5)

    key = jax.random.PRNGKey(0)
    pkey, ikey = jax.random.split(key)
    params = init_params(pkey, cfg)

    B, S = 1, 16
    input_ids = jax.random.randint(ikey, (B, S), 0, cfg['vocab'], dtype=jnp.int32)
    # first 8 tokens are vision tokens, rest language (image-prefixed prompt)
    token_type_ids = jnp.concatenate(
        [jnp.full((B, 8), VISION_TOKEN_TYPE, jnp.int32),
         jnp.full((B, S - 8), LANGUAGE_TOKEN_TYPE, jnp.int32)], axis=1)

    position_ids = build_position_ids(token_type_ids)                 # (B, S)
    vision_token_mask, _ = get_vision_expert_mask(token_type_ids)     # (B, S)

    hidden, logits = cogvlm_forward(params, input_ids, position_ids,
                                    vision_token_mask, cfg)
    jax.block_until_ready((hidden, logits))
    assert hidden.shape == (B, S, cfg['hidden'])
    assert logits.shape == (B, S, cfg['vocab'])
    print("KERNEL_OK")
</pallas_src>

<mosaic_0001>
module attributes {stable_mosaic.version = 11 : i64} {
  func.func @_rmsnorm_first_kernel(%arg0: i32, %arg1: memref<16x256xbf16, #tpu.memory_space<vmem>>, %arg2: memref<1x256xbf16, #tpu.memory_space<vmem>>, %arg3: memref<16x256xbf16, #tpu.memory_space<vmem>>, %arg4: memref<16x256xbf16, #tpu.memory_space<vmem>>) attributes {dimension_semantics = [#tpu.dimension_semantics<parallel>], iteration_bounds = array<i64: 1>, scalar_prefetch = 0 : i64, scratch_operands = 0 : i64, tpu.core_type = #tpu.core_type<tc>, window_params = [{transform_indices = @transform_0, window_bounds = array<i64: 16, 256>}, {pipeline_mode = #tpu.pipeline_mode<synchronous>, transform_indices = @transform_1, window_bounds = array<i64: 1, 256>}, {transform_indices = @transform_2, window_bounds = array<i64: 16, 256>}, {transform_indices = @transform_3, window_bounds = array<i64: 16, 256>}]} {
    %c0 = arith.constant 0 : index
    %c0_0 = arith.constant 0 : index
    %0 = vector.load %arg1[%c0, %c0_0] : memref<16x256xbf16, #tpu.memory_space<vmem>>, vector<16x256xbf16>
    %1 = arith.extf %0 : vector<16x256xbf16> to vector<16x256xf32>
    %c0_1 = arith.constant 0 : index
    %c0_2 = arith.constant 0 : index
    %2 = vector.load %arg1[%c0_1, %c0_2] : memref<16x256xbf16, #tpu.memory_space<vmem>>, vector<16x256xbf16>
    %c0_3 = arith.constant 0 : index
    %c0_4 = arith.constant 0 : index
    %3 = vector.load %arg4[%c0_3, %c0_4] : memref<16x256xbf16, #tpu.memory_space<vmem>>, vector<16x256xbf16>
    tpu.vector_store %arg4[%c0_3, %c0_4], %2 {strides = array<i32>} : memref<16x256xbf16, #tpu.memory_space<vmem>>, vector<16x256xbf16>,
    %4 = arith.mulf %1, %1 : vector<16x256xf32>
    %cst = arith.constant dense<0.000000e+00> : vector<16xf32>
    %5 = vector.multi_reduction <add>, %4, %cst [1] : vector<16x256xf32> to vector<16xf32>
    %6 = vector.shape_cast %5 : vector<16xf32> to vector<16x1xf32>
    %cst_5 = arith.constant 2.560000e+02 : f32
    %7 = vector.broadcast %cst_5 : f32 to vector<16x1xf32>
    %8 = arith.divf %6, %7 : vector<16x1xf32>
    %cst_6 = arith.constant 9.99999974E-6 : f32
    %9 = vector.broadcast %cst_6 : f32 to vector<16x1xf32>
    %10 = arith.addf %8, %9 : vector<16x1xf32>
    %11 = math.rsqrt %10 : vector<16x1xf32>
    %12 = vector.broadcast %11 : vector<16x1xf32> to vector<16x256xf32>
    %13 = arith.mulf %1, %12 : vector<16x256xf32>
    %c0_7 = arith.constant 0 : index
    %c0_8 = arith.constant 0 : index
    %14 = vector.load %arg2[%c0_7, %c0_8] : memref<1x256xbf16, #tpu.memory_space<vmem>>, vector<1x256xbf16>
    %15 = arith.extf %14 : vector<1x256xbf16> to vector<1x256xf32>
    %16 = vector.broadcast %15 : vector<1x256xf32> to vector<16x256xf32>
    %17 = arith.mulf %13, %16 : vector<16x256xf32>
    %18 = arith.truncf %17 : vector<16x256xf32> to vector<16x256xbf16>
    %c0_9 = arith.constant 0 : index
    %c0_10 = arith.constant 0 : index
    %19 = vector.load %arg3[%c0_9, %c0_10] : memref<16x256xbf16, #tpu.memory_space<vmem>>, vector<16x256xbf16>
    tpu.vector_store %arg3[%c0_9, %c0_10], %18 {strides = array<i32>} : memref<16x256xbf16, #tpu.memory_space<vmem>>, vector<16x256xbf16>,
    return
  }
  func.func @transform_0(%arg0: i32) -> (i32, i32) {
    %c0_i32 = arith.constant 0 : i32
    %c0_i32_0 = arith.constant 0 : i32
    return %arg0, %c0_i32 : i32, i32
  }
  func.func @transform_1(%arg0: i32) -> (i32, i32) {
    %c0_i32 = arith.constant 0 : i32
    %c0_i32_0 = arith.constant 0 : i32
    %c0_i32_1 = arith.constant 0 : i32
    return %c0_i32, %c0_i32_0 : i32, i32
  }
  func.func @transform_2(%arg0: i32) -> (i32, i32) {
    %c0_i32 = arith.constant 0 : i32
    %c0_i32_0 = arith.constant 0 : i32
    return %arg0, %c0_i32 : i32, i32
  }
  func.func @transform_3(%arg0: i32) -> (i32, i32) {
    %c0_i32 = arith.constant 0 : i32
    %c0_i32_0 = arith.constant 0 : i32
    return %arg0, %c0_i32 : i32, i32
  }
}

</mosaic_0001>

<llo_original>
// kernel: tpu_custom_call.1
$region0: #{tpu_custom_call.1}
  #allocation0 [shape = 'u32[]', space=smem, size = 0x4, offset = 0x4, fixed_abs, tag = 'smem constant byte address 0x4 - core index']
  #allocation1 [shape = 'u32[72,128]{1,0:T(1,128)}', space=vmem, size = 0x9000, scoped, tag = 'internal scratch']
  %s0 = inlined_call_operand.hbm [shape: bf16[16,256], index: 0, kind: input, shape index: {}]
  %s1 = inlined_call_operand.hbm [shape: bf16[1,256], index: 1, kind: input, shape index: {}]
  %s2 = inlined_call_operand.hbm [shape: bf16[16,256], index: 2, kind: output, shape index: {0}]
  %s3 = inlined_call_operand.hbm [shape: bf16[16,256], index: 3, kind: output, shape index: {1}]
  %4 = xla_tuple %s2, %s3
  %s5 = sld [smem:[#allocation0]]
  $region34: #{tpu_custom_call.1} parent=0
    _
  %s7 = ssub.s32 1, %s5
  %s8 = scalar_select 0, %s7, %s5
  $region1: #{tpu_custom_call.1} parent=0
    #allocation2 [shape = 'u8[8192]{0}', space=vmem, size = 0x2000, scoped, tag = 'input window, operand 0, single buffered']
    #allocation3 [shape = 's32[1]{0}', space=sflag, size = 0x4, scoped, tag = 'scoped memory for tpu_custom_call.1']
    #allocation4 [shape = 's32[1]{0}', space=sflag, size = 0x4, scoped, tag = 'scoped memory for tpu_custom_call.1']
    #allocation5 [shape = 'u8[1024]{0}', space=vmem, size = 0x400, scoped, tag = 'input window, operand 1, single buffered']
    #allocation6 [shape = 's32[1]{0}', space=sflag, size = 0x4, scoped, tag = 'scoped memory for tpu_custom_call.1']
    #allocation7 [shape = 'u8[8192]{0}', space=vmem, size = 0x2000, scoped, tag = 'output window, operand 0, single buffered']
    #allocation8 [shape = 'u8[8192]{0}', space=vmem, size = 0x2000, scoped, tag = 'output window, operand 1, single buffered']
    #allocation9 [shape = 's32[1]{0}', space=sflag, size = 0x4, scoped, tag = 'scoped memory for tpu_custom_call.1']
    %9 = vsyncpa [#allocation3], 0
    %10 = vsyncpa [#allocation6], 0
    %11 = vsyncpa [#allocation4], 0
    %12 = vsyncpa [#allocation9], 0
    // Predicated region
    $region2: #{tpu_custom_call.1} parent=1 // pred_check
      _
    $region3: #{tpu_custom_call.1} parent=1 // pred_check_branch
      %14 = sbr.rel (0) target = $region5
    $region4: #{tpu_custom_call.1} parent=1 // pred_region
      %16 = vsyncadd [#allocation3], 0
      %s17 = sshll.u32 %s0, 4
      %s18 = int_to_ptr.hbm [resolvable:$true] %s17
      %s19 = sshll.u32 [#allocation2], 4
      %s20 = int_to_ptr.vmem [resolvable:$true] %s19
      %25 = dma.hbm_to_vmem [thread:$0]  %s18, 256, %s20, [#allocation3], 128, 128, 8
    $region5: #{tpu_custom_call.1} parent=1 // pred_fallthru
      _
    // Predicated region
    $region6: #{tpu_custom_call.1} parent=1 // pred_check
      _
    $region7: #{tpu_custom_call.1} parent=1 // pred_check_branch
      %27 = sbr.rel (0) target = $region9
    $region8: #{tpu_custom_call.1} parent=1 // pred_region
      %29 = vsyncadd [#allocation6], 0
      %s31 = sshll.u32 %s1, 4
      %s32 = int_to_ptr.hbm [resolvable:$true] %s31
      %s33 = sshll.u32 [#allocation5], 4
      %s34 = int_to_ptr.vmem [resolvable:$true] %s33
      %36 = dma.hbm_to_vmem [thread:$0]  %s32, 32, %s34, [#allocation6]
    $region9: #{tpu_custom_call.1} parent=1 // pred_fallthru
      _
    // Predicated region
    $region10: #{tpu_custom_call.1} parent=1 // pred_check
      _
    $region11: #{tpu_custom_call.1} parent=1 // pred_check_branch
      %38 = sbr.rel (0) target = $region13
    $region12: #{tpu_custom_call.1} parent=1 // pred_region
      %40 = dma.done [#allocation3], 256
    $region13: #{tpu_custom_call.1} parent=1 // pred_fallthru
      _
    // Predicated region
    $region14: #{tpu_custom_call.1} parent=1 // pred_check
      _
    $region15: #{tpu_custom_call.1} parent=1 // pred_check_branch
      %42 = sbr.rel (0) target = $region17
    $region16: #{tpu_custom_call.1} parent=1 // pred_region
      %44 = dma.done [#allocation6], 32
    $region17: #{tpu_custom_call.1} parent=1 // pred_fallthru
      _
    %v45 = vld [vmem:[#allocation2] sm:$0xff]
    %v46 = vld [vmem:[#allocation2 + $0x8] sm:$0xff]
    %v47 = vunpack.c.l.bf16 %v45
    %v48 = vunpack.c.h.bf16 %v45
    %v49 = vunpack.c.l.bf16 %v46
    %v50 = vunpack.c.h.bf16 %v46
    %51 = vst [vmem:[#allocation8] sm:$0xff] %v45
    %52 = vst [vmem:[#allocation8 + $0x8] sm:$0xff] %v46
    %v53 = vmul.f32 %v47, %v47
    %v54 = vmul.f32 %v48, %v48
    %v55 = vmul.f32 %v49, %v49
    %v56 = vmul.f32 %v50, %v50
    %v57 = vadd.f32 %v53, %v54
    %58 = vadd.xlane.f32.xlu0 %v57
    %v59 = vpop.xlane.xlu0 %58
    %v60 = vadd.f32 %v55, %v56
    %61 = vadd.xlane.f32.xlu0 %v60
    %v62 = vpop.xlane.xlu0 %61
    %v63 = vrcp.pop 256.0
    %v64 = vmul.f32 256.0, %v63
    %v65 = vsub.f32 1.0, %v64
    %v66 = vmul.f32 %v63, %v65
    %v67 = vadd.f32 %v63, %v66
    %vm68 = vweird.f32 %v63
    %v69 = vsel %vm68, %v63, %v67
    %v70 = vmul.f32 %v59, %v69
    %v71 = vmul.f32 %v62, %v69
    %v72 = vadd.f32 %v70, 1e-05
    %v73 = vadd.f32 %v71, 1e-05
    %v74 = vrsqrt.pop %v72
    %v75 = vmul.f32 %v74, %v72
    %v76 = vmul.f32 %v75, %v74
    %v77 = vmul.f32 0.5, %v76
    %v78 = vsub.f32 1.5, %v77
    %v79 = vmul.f32 %v74, %v78
    %vm80 = vweird.f32 %v72
    %vm81 = vweird.f32 %v74
    %vm82 = vmor %vm80, %vm81
    %v83 = vsel %vm82, %v74, %v79
    %v84 = vrsqrt.pop %v73
    %v85 = vmul.f32 %v84, %v73
    %v86 = vmul.f32 %v85, %v84
    %v87 = vmul.f32 0.5, %v86
    %v88 = vsub.f32 1.5, %v87
    %v89 = vmul.f32 %v84, %v88
    %vm90 = vweird.f32 %v73
    %vm91 = vweird.f32 %v84
    %vm92 = vmor %vm90, %vm91
    %v93 = vsel %vm92, %v84, %v89
    %v94 = vmul.f32 %v47, %v83
    %v95 = vmul.f32 %v48, %v83
    %v96 = vmul.f32 %v49, %v93
    %v97 = vmul.f32 %v50, %v93
    %v98 = vld [vmem:[#allocation5] sm:$0x3]
    %v99 = vunpack.c.l.bf16 %v98
    %v101 = vperm.slane %v99, 0
    %v102 = vperm.slane %v99, 2
    %v105 = vperm.slane %v101, 0
    %v106 = vperm.slane %v102, 0
    %v107 = vmul.f32 %v94, %v105
    %v108 = vmul.f32 %v95, %v106
    %v109 = vmul.f32 %v96, %v105
    %v110 = vmul.f32 %v97, %v106
    %v111 = vpack.c.bf16 %v108, %v107
    %v112 = vpack.c.bf16 %v110, %v109
    %113 = vst [vmem:[#allocation7] sm:$0xff] %v111
    %114 = vst [vmem:[#allocation7 + $0x8] sm:$0xff] %v112
    // Predicated region
    $region18: #{tpu_custom_call.1} parent=1 // pred_check
      _
    $region19: #{tpu_custom_call.1} parent=1 // pred_check_branch
      %116 = sbr.rel (0) target = $region21
    $region20: #{tpu_custom_call.1} parent=1 // pred_region
      %118 = vsyncadd [#allocation4], 0
      %s119 = sshll.u32 [#allocation7], 4
      %s120 = int_to_ptr.vmem [resolvable:$true] %s119
      %s121 = sshll.u32 %s2, 4
      %s122 = int_to_ptr.hbm [resolvable:$true] %s121
      %127 = dma.vmem_to_hbm [thread:$0]  %s120, 256, %s122, [#allocation4], 128, 128, 8
    $region21: #{tpu_custom_call.1} parent=1 // pred_fallthru
      _
    // Predicated region
    $region22: #{tpu_custom_call.1} parent=1 // pred_check
      _
    $region23: #{tpu_custom_call.1} parent=1 // pred_check_branch
      %129 = sbr.rel (0) target = $region25
    $region24: #{tpu_custom_call.1} parent=1 // pred_region
      %131 = vsyncadd [#allocation9], 0
      %s132 = sshll.u32 [#allocation8], 4
      %s133 = int_to_ptr.vmem [resolvable:$true] %s132
      %s134 = sshll.u32 %s3, 4
      %s135 = int_to_ptr.hbm [resolvable:$true] %s134
      %140 = dma.vmem_to_hbm [thread:$0]  %s133, 256, %s135, [#allocation9], 128, 128, 8
    $region25: #{tpu_custom_call.1} parent=1 // pred_fallthru
      _
    // Predicated region
    $region26: #{tpu_custom_call.1} parent=1 // pred_check
      _
    $region27: #{tpu_custom_call.1} parent=1 // pred_check_branch
      %142 = sbr.rel (0) target = $region29
    $region28: #{tpu_custom_call.1} parent=1 // pred_region
      %144 = dma.done [#allocation4], 256
    $region29: #{tpu_custom_call.1} parent=1 // pred_fallthru
      _
    // Predicated region
    $region30: #{tpu_custom_call.1} parent=1 // pred_check
      _
    $region31: #{tpu_custom_call.1} parent=1 // pred_check_branch
      %146 = sbr.rel (0) target = $region33
    $region32: #{tpu_custom_call.1} parent=1 // pred_region
      %148 = dma.done [#allocation9], 256
    $region33: #{tpu_custom_call.1} parent=1 // pred_fallthru
      _
    %149 = vsyncpa [#allocation3], 1
    %150 = vsyncpa [#allocation6], 1
    %151 = vsyncpa [#allocation4], 1
    %152 = vsyncpa [#allocation9], 1

</llo_original>
